<compile_context>
chip_gen: v7x
topology: tpu7x:2x2x1
jax: 0.10.0
libtpu: 0.0.40
codegen_flags: <defaults>
</compile_context>

<pallas_src>
import jax
import jax.numpy as jnp
import numpy as np
from jax.experimental import pallas as pl
from jax.experimental.pallas import tpu as pltpu

N = 2     # batch
C = 4     # channels
H = 16
W = 16
K = 3     # conv kernel size

CP = 8                # channel rows padded to one f32 sublane tile
NHW = N * H * W       # 512 = 4 * 128 lanes: lane-dense working axis

# Tap offsets (oy, ox) in row-major (dy, dx) order -> matches OIHW weight flattening.
_OFFSETS = tuple((dy - 1, dx - 1) for dy in range(K) for dx in range(K))


def _taps(v, mask_ref):
    """Shifted-tap matrix (K*K*CP, NHW) for a 3x3 'same' conv.

    v: (CP, NHW) channel-padded, plane-flattened input. Row t*CP + ci of the
    result is input channel ci shifted by tap t; out-of-image positions (and
    roll wrap / cross-batch leakage) are zeroed via the precomputed masks.
    """
    rows = []
    for t, (oy, ox) in enumerate(_OFFSETS):
        s = oy * W + ox                               # flat in-image shift for this tap
        if s == 0:
            rows.append(v)                            # centre tap: no shift, no mask
        else:
            rolled = pltpu.roll(v, (-s) % NHW, 1)     # rolled[p] = v[(p + s) % NHW]
            rows.append(rolled * mask_ref[t])         # (1, NHW) mask, sublane-broadcast
    return jnp.concatenate(rows, axis=0)              # (72, NHW), 8-row aligned blocks


def _sam_kernel(w12_ref, w3_ref, b12_ref, b3_ref, mask_ref,
                x_ref, ximg_ref, x1_ref, img_ref):
    x = x_ref[...]                                    # (CP, NHW)
    tx = _taps(x, mask_ref)                           # (72, NHW)

    # conv1(x) and conv2(x) share the same tap matrix -> one stacked MXU matmul.
    y12 = (jnp.dot(w12_ref[...], tx, preferred_element_type=jnp.float32)
           + b12_ref[...])                            # (2*CP, NHW)
    y1 = y12[:CP]                                     # conv1(x)          (tile-aligned slice)
    img = y12[CP:] + ximg_ref[...]                    # conv2(x) + x_img  (tile-aligned slice)
    img_ref[...] = img

    # x1 = conv1(x) * sigmoid(conv3(img)) + x
    ti = _taps(img, mask_ref)
    y3 = jnp.dot(w3_ref[...], ti, preferred_element_type=jnp.float32) + b3_ref[...]
    x1_ref[...] = y1 * jax.nn.sigmoid(y3) + x


# ---------------- host-side packing (layout plumbing only) ----------------
def _to_lane_major(a):
    """(N, c, H, W) -> (CP, N*H*W) with channel rows zero-padded to CP."""
    c = a.shape[1]
    flat = jnp.transpose(a, (1, 0, 2, 3)).reshape(c, NHW)
    return jnp.pad(flat, ((0, CP - c), (0, 0)))


def _from_lane_major(a, c):
    """(CP, N*H*W) -> (N, c, H, W)."""
    return jnp.transpose(a[:c].reshape(c, N, H, W), (1, 0, 2, 3))


def _pack_weight(w):
    """(cout, cin, K, K) OIHW -> (CP, K*K*CP); column index = tap*CP + cin."""
    cout, cin = w.shape[0], w.shape[1]
    wt = jnp.transpose(w, (2, 3, 0, 1)).reshape(K * K, cout, cin)   # (9, cout, cin)
    m = jnp.zeros((CP, K * K, CP), w.dtype)
    m = m.at[:cout, :, :cin].set(jnp.transpose(wt, (1, 0, 2)))
    return m.reshape(CP, K * K * CP)


def _pack_bias(b):
    return jnp.pad(b, (0, CP - b.shape[0])).reshape(CP, 1)


def _tap_masks():
    """(9, 1, NHW) f32: 1 where a tap stays inside its own (H, W) image."""
    p = np.arange(NHW)
    yy = (p // W) % H
    xx = p % W
    m = np.zeros((K * K, 1, NHW), np.float32)
    for t, (oy, ox) in enumerate(_OFFSETS):
        valid = ((yy + oy >= 0) & (yy + oy < H) &
                 (xx + ox >= 0) & (xx + ox < W))
        m[t, 0] = valid.astype(np.float32)
    return jnp.asarray(m)


@jax.jit
def sam_forward(x, x_img, params):
    """x: (N, C, H, W) f32, x_img: (N, 3, H, W) f32 -> (x1, img)."""
    w1, b1, w2, b2, w3, b3 = params

    # Stack conv1 / conv2 (same input taps) into a single (2*CP, 72) LHS.
    w12 = jnp.concatenate([_pack_weight(w1), _pack_weight(w2)], axis=0)
    b12 = jnp.concatenate([_pack_bias(b1), _pack_bias(b2)], axis=0)

    args = (
        w12, _pack_weight(w3),
        b12, _pack_bias(b3),
        _tap_masks(),
        _to_lane_major(x), _to_lane_major(x_img),
    )

    vmem = pl.BlockSpec(memory_space=pltpu.MemorySpace.VMEM)
    x1_p, img_p = pl.pallas_call(
        _sam_kernel,
        out_shape=(jax.ShapeDtypeStruct((CP, NHW), jnp.float32),
                   jax.ShapeDtypeStruct((CP, NHW), jnp.float32)),
        in_specs=[vmem] * len(args),
        out_specs=(vmem, vmem),
        compiler_params=pltpu.CompilerParams(vmem_limit_bytes=16 << 20),
    )(*args)

    return _from_lane_major(x1_p, C), _from_lane_major(img_p, 3)


# ---- pure-JAX reference for correctness checking -------------------------
def _conv_ref(x, w, b):
    y = jax.lax.conv_general_dilated(
        x, w, window_strides=(1, 1), padding=((1, 1), (1, 1)),
        dimension_numbers=("NCHW", "OIHW", "NCHW"))
    return y + b[None, :, None, None]


def sam_ref(x, x_img, params):
    w1, b1, w2, b2, w3, b3 = params
    x1 = _conv_ref(x, w1, b1)
    img = _conv_ref(x, w2, b2) + x_img
    x2 = jax.nn.sigmoid(_conv_ref(img, w3, b3))
    return x1 * x2 + x, img


if __name__ == "__main__":
    key = jax.random.PRNGKey(0)
    ks = jax.random.split(key, 8)

    # Deterministic synthetic parameters (PyTorch OIHW conv weight layout).
    w1 = 0.1 * jax.random.normal(ks[0], (C, C, K, K), jnp.float32)
    b1 = 0.1 * jax.random.normal(ks[1], (C,), jnp.float32)
    w2 = 0.1 * jax.random.normal(ks[2], (3, C, K, K), jnp.float32)
    b2 = 0.1 * jax.random.normal(ks[3], (3,), jnp.float32)
    w3 = 0.1 * jax.random.normal(ks[4], (C, 3, K, K), jnp.float32)
    b3 = 0.1 * jax.random.normal(ks[5], (C,), jnp.float32)
    params = (w1, b1, w2, b2, w3, b3)

    x = jax.random.normal(ks[6], (N, C, H, W), jnp.float32)
    x_img = jax.random.normal(ks[7], (N, 3, H, W), jnp.float32)

    x1, img = sam_forward(x, x_img, params)
    jax.block_until_ready((x1, img))

    x1_ref, img_ref = sam_ref(x, x_img, params)
    # Tolerance allows for MXU multi-pass f32 rounding differences vs the XLA
    # convolution reference; structural bugs produce errors orders of
    # magnitude larger than this.
    np.testing.assert_allclose(np.asarray(x1), np.asarray(x1_ref),
                               rtol=5e-3, atol=5e-3)
    np.testing.assert_allclose(np.asarray(img), np.asarray(img_ref),
                               rtol=5e-3, atol=5e-3)
    print("KERNEL_OK")
</pallas_src>

<mosaic_0001>
module attributes {stable_mosaic.version = 11 : i64} {
  func.func @_sam_kernel(%arg0: memref<16x72xf32, #tpu.memory_space<vmem>>, %arg1: memref<8x72xf32, #tpu.memory_space<vmem>>, %arg2: memref<16x1xf32, #tpu.memory_space<vmem>>, %arg3: memref<8x1xf32, #tpu.memory_space<vmem>>, %arg4: memref<9x1x512xf32, #tpu.memory_space<vmem>>, %arg5: memref<8x512xf32, #tpu.memory_space<vmem>>, %arg6: memref<8x512xf32, #tpu.memory_space<vmem>>, %arg7: memref<8x512xf32, #tpu.memory_space<vmem>>, %arg8: memref<8x512xf32, #tpu.memory_space<vmem>>) attributes {dimension_semantics = [], scalar_prefetch = 0 : i64, scratch_operands = 0 : i64, tpu.core_type = #tpu.core_type<tc>} {
    %c0 = arith.constant 0 : index
    %c0_0 = arith.constant 0 : index
    %0 = vector.load %arg5[%c0, %c0_0] : memref<8x512xf32, #tpu.memory_space<vmem>>, vector<8x512xf32>
    %c17_i32 = arith.constant 17 : i32
    %1 = tpu.dynamic_rotate %0 by %c17_i32 dim 1 : vector<8x512xf32>, i32 -> vector<8x512xf32>
    %c0_1 = arith.constant 0 : index
    %c0_2 = arith.constant 0 : index
    %c0_3 = arith.constant 0 : index
    %2 = vector.load %arg4[%c0_1, %c0_2, %c0_3] : memref<9x1x512xf32, #tpu.memory_space<vmem>>, vector<1x1x512xf32>
    %3 = vector.shape_cast %2 : vector<1x1x512xf32> to vector<1x512xf32>
    %4 = vector.broadcast %3 : vector<1x512xf32> to vector<8x512xf32>
    %5 = arith.mulf %1, %4 : vector<8x512xf32>
    %c16_i32 = arith.constant 16 : i32
    %6 = tpu.dynamic_rotate %0 by %c16_i32 dim 1 : vector<8x512xf32>, i32 -> vector<8x512xf32>
    %c1 = arith.constant 1 : index
    %c0_4 = arith.constant 0 : index
    %c0_5 = arith.constant 0 : index
    %7 = vector.load %arg4[%c1, %c0_4, %c0_5] : memref<9x1x512xf32, #tpu.memory_space<vmem>>, vector<1x1x512xf32>
    %8 = vector.shape_cast %7 : vector<1x1x512xf32> to vector<1x512xf32>
    %9 = vector.broadcast %8 : vector<1x512xf32> to vector<8x512xf32>
    %10 = arith.mulf %6, %9 : vector<8x512xf32>
    %c15_i32 = arith.constant 15 : i32
    %11 = tpu.dynamic_rotate %0 by %c15_i32 dim 1 : vector<8x512xf32>, i32 -> vector<8x512xf32>
    %c2 = arith.constant 2 : index
    %c0_6 = arith.constant 0 : index
    %c0_7 = arith.constant 0 : index
    %12 = vector.load %arg4[%c2, %c0_6, %c0_7] : memref<9x1x512xf32, #tpu.memory_space<vmem>>, vector<1x1x512xf32>
    %13 = vector.shape_cast %12 : vector<1x1x512xf32> to vector<1x512xf32>
    %14 = vector.broadcast %13 : vector<1x512xf32> to vector<8x512xf32>
    %15 = arith.mulf %11, %14 : vector<8x512xf32>
    %c1_i32 = arith.constant 1 : i32
    %16 = tpu.dynamic_rotate %0 by %c1_i32 dim 1 : vector<8x512xf32>, i32 -> vector<8x512xf32>
    %c3 = arith.constant 3 : index
    %c0_8 = arith.constant 0 : index
    %c0_9 = arith.constant 0 : index
    %17 = vector.load %arg4[%c3, %c0_8, %c0_9] : memref<9x1x512xf32, #tpu.memory_space<vmem>>, vector<1x1x512xf32>
    %18 = vector.shape_cast %17 : vector<1x1x512xf32> to vector<1x512xf32>
    %19 = vector.broadcast %18 : vector<1x512xf32> to vector<8x512xf32>
    %20 = arith.mulf %16, %19 : vector<8x512xf32>
    %c511_i32 = arith.constant 511 : i32
    %21 = tpu.dynamic_rotate %0 by %c511_i32 dim 1 : vector<8x512xf32>, i32 -> vector<8x512xf32>
    %c5 = arith.constant 5 : index
    %c0_10 = arith.constant 0 : index
    %c0_11 = arith.constant 0 : index
    %22 = vector.load %arg4[%c5, %c0_10, %c0_11] : memref<9x1x512xf32, #tpu.memory_space<vmem>>, vector<1x1x512xf32>
    %23 = vector.shape_cast %22 : vector<1x1x512xf32> to vector<1x512xf32>
    %24 = vector.broadcast %23 : vector<1x512xf32> to vector<8x512xf32>
    %25 = arith.mulf %21, %24 : vector<8x512xf32>
    %c497_i32 = arith.constant 497 : i32
    %26 = tpu.dynamic_rotate %0 by %c497_i32 dim 1 : vector<8x512xf32>, i32 -> vector<8x512xf32>
    %c6 = arith.constant 6 : index
    %c0_12 = arith.constant 0 : index
    %c0_13 = arith.constant 0 : index
    %27 = vector.load %arg4[%c6, %c0_12, %c0_13] : memref<9x1x512xf32, #tpu.memory_space<vmem>>, vector<1x1x512xf32>
    %28 = vector.shape_cast %27 : vector<1x1x512xf32> to vector<1x512xf32>
    %29 = vector.broadcast %28 : vector<1x512xf32> to vector<8x512xf32>
    %30 = arith.mulf %26, %29 : vector<8x512xf32>
    %c496_i32 = arith.constant 496 : i32
    %31 = tpu.dynamic_rotate %0 by %c496_i32 dim 1 : vector<8x512xf32>, i32 -> vector<8x512xf32>
    %c7 = arith.constant 7 : index
    %c0_14 = arith.constant 0 : index
    %c0_15 = arith.constant 0 : index
    %32 = vector.load %arg4[%c7, %c0_14, %c0_15] : memref<9x1x512xf32, #tpu.memory_space<vmem>>, vector<1x1x512xf32>
    %33 = vector.shape_cast %32 : vector<1x1x512xf32> to vector<1x512xf32>
    %34 = vector.broadcast %33 : vector<1x512xf32> to vector<8x512xf32>
    %35 = arith.mulf %31, %34 : vector<8x512xf32>
    %c495_i32 = arith.constant 495 : i32
    %36 = tpu.dynamic_rotate %0 by %c495_i32 dim 1 : vector<8x512xf32>, i32 -> vector<8x512xf32>
    %c8 = arith.constant 8 : index
    %c0_16 = arith.constant 0 : index
    %c0_17 = arith.constant 0 : index
    %37 = vector.load %arg4[%c8, %c0_16, %c0_17] : memref<9x1x512xf32, #tpu.memory_space<vmem>>, vector<1x1x512xf32>
    %38 = vector.shape_cast %37 : vector<1x1x512xf32> to vector<1x512xf32>
    %39 = vector.broadcast %38 : vector<1x512xf32> to vector<8x512xf32>
    %40 = arith.mulf %36, %39 : vector<8x512xf32>
    %41 = tpu.concatenate %5, %10, %15, %20, %0, %25, %30, %35, %40 in 0 : vector<8x512xf32>, vector<8x512xf32>, vector<8x512xf32>, vector<8x512xf32>, vector<8x512xf32>, vector<8x512xf32>, vector<8x512xf32>, vector<8x512xf32>, vector<8x512xf32> -> vector<72x512xf32>
    %c0_18 = arith.constant 0 : index
    %c0_19 = arith.constant 0 : index
    %42 = vector.load %arg0[%c0_18, %c0_19] : memref<16x72xf32, #tpu.memory_space<vmem>>, vector<16x72xf32>
    %cst = arith.constant dense<0.000000e+00> : vector<16x512xf32>
    %43 = tpu.matmul %42, %41, %cst {dimension_numbers = #tpu.dot_dimension_numbers<[1], [0], [0], [1], [0, 0, 1, 1], [], []>} : vector<16x72xf32>, vector<72x512xf32>, vector<16x512xf32> -> vector<16x512xf32>
    %c0_20 = arith.constant 0 : index
    %c0_21 = arith.constant 0 : index
    %44 = vector.load %arg2[%c0_20, %c0_21] : memref<16x1xf32, #tpu.memory_space<vmem>>, vector<16x1xf32>
    %45 = vector.broadcast %44 : vector<16x1xf32> to vector<16x512xf32>
    %46 = arith.addf %43, %45 : vector<16x512xf32>
    %47 = vector.extract_strided_slice %46 {offsets = [0, 0], sizes = [8, 512], strides = [1, 1]} : vector<16x512xf32> to vector<8x512xf32>
    %48 = vector.extract_strided_slice %46 {offsets = [8, 0], sizes = [8, 512], strides = [1, 1]} : vector<16x512xf32> to vector<8x512xf32>
    %c0_22 = arith.constant 0 : index
    %c0_23 = arith.constant 0 : index
    %49 = vector.load %arg6[%c0_22, %c0_23] : memref<8x512xf32, #tpu.memory_space<vmem>>, vector<8x512xf32>
    %50 = arith.addf %48, %49 : vector<8x512xf32>
    %c0_24 = arith.constant 0 : index
    %c0_25 = arith.constant 0 : index
    %51 = vector.load %arg8[%c0_24, %c0_25] : memref<8x512xf32, #tpu.memory_space<vmem>>, vector<8x512xf32>
    tpu.vector_store %arg8[%c0_24, %c0_25], %50 {strides = array<i32>} : memref<8x512xf32, #tpu.memory_space<vmem>>, vector<8x512xf32>,
    %c17_i32_26 = arith.constant 17 : i32
    %52 = tpu.dynamic_rotate %50 by %c17_i32_26 dim 1 : vector<8x512xf32>, i32 -> vector<8x512xf32>
    %c0_27 = arith.constant 0 : index
    %c0_28 = arith.constant 0 : index
    %c0_29 = arith.constant 0 : index
    %53 = vector.load %arg4[%c0_27, %c0_28, %c0_29] : memref<9x1x512xf32, #tpu.memory_space<vmem>>, vector<1x1x512xf32>
    %54 = vector.shape_cast %53 : vector<1x1x512xf32> to vector<1x512xf32>
    %55 = vector.broadcast %54 : vector<1x512xf32> to vector<8x512xf32>
    %56 = arith.mulf %52, %55 : vector<8x512xf32>
    %c16_i32_30 = arith.constant 16 : i32
    %57 = tpu.dynamic_rotate %50 by %c16_i32_30 dim 1 : vector<8x512xf32>, i32 -> vector<8x512xf32>
    %c1_31 = arith.constant 1 : index
    %c0_32 = arith.constant 0 : index
    %c0_33 = arith.constant 0 : index
    %58 = vector.load %arg4[%c1_31, %c0_32, %c0_33] : memref<9x1x512xf32, #tpu.memory_space<vmem>>, vector<1x1x512xf32>
    %59 = vector.shape_cast %58 : vector<1x1x512xf32> to vector<1x512xf32>
    %60 = vector.broadcast %59 : vector<1x512xf32> to vector<8x512xf32>
    %61 = arith.mulf %57, %60 : vector<8x512xf32>
    %c15_i32_34 = arith.constant 15 : i32
    %62 = tpu.dynamic_rotate %50 by %c15_i32_34 dim 1 : vector<8x512xf32>, i32 -> vector<8x512xf32>
    %c2_35 = arith.constant 2 : index
    %c0_36 = arith.constant 0 : index
    %c0_37 = arith.constant 0 : index
    %63 = vector.load %arg4[%c2_35, %c0_36, %c0_37] : memref<9x1x512xf32, #tpu.memory_space<vmem>>, vector<1x1x512xf32>
    %64 = vector.shape_cast %63 : vector<1x1x512xf32> to vector<1x512xf32>
    %65 = vector.broadcast %64 : vector<1x512xf32> to vector<8x512xf32>
    %66 = arith.mulf %62, %65 : vector<8x512xf32>
    %c1_i32_38 = arith.constant 1 : i32
    %67 = tpu.dynamic_rotate %50 by %c1_i32_38 dim 1 : vector<8x512xf32>, i32 -> vector<8x512xf32>
    %c3_39 = arith.constant 3 : index
    %c0_40 = arith.constant 0 : index
    %c0_41 = arith.constant 0 : index
    %68 = vector.load %arg4[%c3_39, %c0_40, %c0_41] : memref<9x1x512xf32, #tpu.memory_space<vmem>>, vector<1x1x512xf32>
    %69 = vector.shape_cast %68 : vector<1x1x512xf32> to vector<1x512xf32>
    %70 = vector.broadcast %69 : vector<1x512xf32> to vector<8x512xf32>
    %71 = arith.mulf %67, %70 : vector<8x512xf32>
    %c511_i32_42 = arith.constant 511 : i32
    %72 = tpu.dynamic_rotate %50 by %c511_i32_42 dim 1 : vector<8x512xf32>, i32 -> vector<8x512xf32>
    %c5_43 = arith.constant 5 : index
    %c0_44 = arith.constant 0 : index
    %c0_45 = arith.constant 0 : index
    %73 = vector.load %arg4[%c5_43, %c0_44, %c0_45] : memref<9x1x512xf32, #tpu.memory_space<vmem>>, vector<1x1x512xf32>
    %74 = vector.shape_cast %73 : vector<1x1x512xf32> to vector<1x512xf32>
    %75 = vector.broadcast %74 : vector<1x512xf32> to vector<8x512xf32>
    %76 = arith.mulf %72, %75 : vector<8x512xf32>
    %c497_i32_46 = arith.constant 497 : i32
    %77 = tpu.dynamic_rotate %50 by %c497_i32_46 dim 1 : vector<8x512xf32>, i32 -> vector<8x512xf32>
    %c6_47 = arith.constant 6 : index
    %c0_48 = arith.constant 0 : index
    %c0_49 = arith.constant 0 : index
    %78 = vector.load %arg4[%c6_47, %c0_48, %c0_49] : memref<9x1x512xf32, #tpu.memory_space<vmem>>, vector<1x1x512xf32>
    %79 = vector.shape_cast %78 : vector<1x1x512xf32> to vector<1x512xf32>
    %80 = vector.broadcast %79 : vector<1x512xf32> to vector<8x512xf32>
    %81 = arith.mulf %77, %80 : vector<8x512xf32>
    %c496_i32_50 = arith.constant 496 : i32
    %82 = tpu.dynamic_rotate %50 by %c496_i32_50 dim 1 : vector<8x512xf32>, i32 -> vector<8x512xf32>
    %c7_51 = arith.constant 7 : index
    %c0_52 = arith.constant 0 : index
    %c0_53 = arith.constant 0 : index
    %83 = vector.load %arg4[%c7_51, %c0_52, %c0_53] : memref<9x1x512xf32, #tpu.memory_space<vmem>>, vector<1x1x512xf32>
    %84 = vector.shape_cast %83 : vector<1x1x512xf32> to vector<1x512xf32>
    %85 = vector.broadcast %84 : vector<1x512xf32> to vector<8x512xf32>
    %86 = arith.mulf %82, %85 : vector<8x512xf32>
    %c495_i32_54 = arith.constant 495 : i32
    %87 = tpu.dynamic_rotate %50 by %c495_i32_54 dim 1 : vector<8x512xf32>, i32 -> vector<8x512xf32>
    %c8_55 = arith.constant 8 : index
    %c0_56 = arith.constant 0 : index
    %c0_57 = arith.constant 0 : index
    %88 = vector.load %arg4[%c8_55, %c0_56, %c0_57] : memref<9x1x512xf32, #tpu.memory_space<vmem>>, vector<1x1x512xf32>
    %89 = vector.shape_cast %88 : vector<1x1x512xf32> to vector<1x512xf32>
    %90 = vector.broadcast %89 : vector<1x512xf32> to vector<8x512xf32>
    %91 = arith.mulf %87, %90 : vector<8x512xf32>
    %92 = tpu.concatenate %56, %61, %66, %71, %50, %76, %81, %86, %91 in 0 : vector<8x512xf32>, vector<8x512xf32>, vector<8x512xf32>, vector<8x512xf32>, vector<8x512xf32>, vector<8x512xf32>, vector<8x512xf32>, vector<8x512xf32>, vector<8x512xf32> -> vector<72x512xf32>
    %c0_58 = arith.constant 0 : index
    %c0_59 = arith.constant 0 : index
    %93 = vector.load %arg1[%c0_58, %c0_59] : memref<8x72xf32, #tpu.memory_space<vmem>>, vector<8x72xf32>
    %cst_60 = arith.constant dense<0.000000e+00> : vector<8x512xf32>
    %94 = tpu.matmul %93, %92, %cst_60 {dimension_numbers = #tpu.dot_dimension_numbers<[1], [0], [0], [1], [0, 0, 1, 1], [], []>} : vector<8x72xf32>, vector<72x512xf32>, vector<8x512xf32> -> vector<8x512xf32>
    %c0_61 = arith.constant 0 : index
    %c0_62 = arith.constant 0 : index
    %95 = vector.load %arg3[%c0_61, %c0_62] : memref<8x1xf32, #tpu.memory_space<vmem>>, vector<8x1xf32>
    %96 = vector.broadcast %95 : vector<8x1xf32> to vector<8x512xf32>
    %97 = arith.addf %94, %96 : vector<8x512xf32>
    %98 = arith.negf %97 : vector<8x512xf32>
    %99 = math.exp %98 : vector<8x512xf32>
    %cst_63 = arith.constant 1.000000e+00 : f32
    %100 = vector.broadcast %cst_63 : f32 to vector<8x512xf32>
    %101 = arith.addf %100, %99 : vector<8x512xf32>
    %102 = arith.divf %100, %101 : vector<8x512xf32>
    %103 = arith.mulf %47, %102 : vector<8x512xf32>
    %104 = arith.addf %103, %0 : vector<8x512xf32>
    %c0_64 = arith.constant 0 : index
    %c0_65 = arith.constant 0 : index
    %105 = vector.load %arg7[%c0_64, %c0_65] : memref<8x512xf32, #tpu.memory_space<vmem>>, vector<8x512xf32>
    tpu.vector_store %arg7[%c0_64, %c0_65], %104 {strides = array<i32>} : memref<8x512xf32, #tpu.memory_space<vmem>>, vector<8x512xf32>,
    return
  }
}

</mosaic_0001>

<llo_original>
// kernel: sam_forward.1
$region0: #{sam_forward.1}
  #allocation0 [shape = 'u32[]', space=smem, size = 0x4, offset = 0x4, fixed_abs, tag = 'smem constant byte address 0x4 - core index']
  #allocation1 [shape = 'u32[144,128]{1,0:T(1,128)}', space=vmem, size = 0x12000, scoped, tag = 'internal scratch']
  %s0 = inlined_call_operand.vmem [shape: f32[16,72], index: 0, kind: input, shape index: {}]
  %s1 = inlined_call_operand.vmem [shape: f32[8,72], index: 1, kind: input, shape index: {}]
  %s2 = inlined_call_operand.vmem [shape: f32[16,1], index: 2, kind: input, shape index: {}]
  %s3 = inlined_call_operand.vmem [shape: f32[8,1], index: 3, kind: input, shape index: {}]
  %s4 = inlined_call_operand.vmem [shape: f32[9,1,512], index: 4, kind: input, shape index: {}]
  %s5 = inlined_call_operand.vmem [shape: f32[8,512], index: 5, kind: input, shape index: {}]
  %s6 = inlined_call_operand.vmem [shape: f32[8,512], index: 6, kind: input, shape index: {}]
  %s7 = inlined_call_operand.vmem [shape: f32[8,512], index: 7, kind: output, shape index: {0}]
  %s8 = inlined_call_operand.vmem [shape: f32[8,512], index: 8, kind: output, shape index: {1}]
  %9 = xla_tuple %s7, %s8
  %s10 = sld [smem:[#allocation0]]
  $region46: #{sam_forward.1} parent=0
    _
  %s12 = ssub.s32 1, %s10
  %s13 = scalar_select 0, %s12, %s10
  // Predicated region
  $region2: #{sam_forward.1} parent=0 // pred_check
    _
  $region3: #{sam_forward.1} parent=0 // pred_check_branch
    %15 = sbr.rel (0) target = $region5
  $region4: #{sam_forward.1} parent=0 // pred_region
    _
  $region5: #{sam_forward.1} parent=0 // pred_fallthru
    _
  // Predicated region
  $region6: #{sam_forward.1} parent=0 // pred_check
    _
  $region7: #{sam_forward.1} parent=0 // pred_check_branch
    %17 = sbr.rel (0) target = $region9
  $region8: #{sam_forward.1} parent=0 // pred_region
    _
  $region9: #{sam_forward.1} parent=0 // pred_fallthru
    _
  // Predicated region
  $region10: #{sam_forward.1} parent=0 // pred_check
    _
  $region11: #{sam_forward.1} parent=0 // pred_check_branch
    %19 = sbr.rel (0) target = $region13
  $region12: #{sam_forward.1} parent=0 // pred_region
    _
  $region13: #{sam_forward.1} parent=0 // pred_fallthru
    _
  // Predicated region
  $region14: #{sam_forward.1} parent=0 // pred_check
    _
  $region15: #{sam_forward.1} parent=0 // pred_check_branch
    %21 = sbr.rel (0) target = $region17
  $region16: #{sam_forward.1} parent=0 // pred_region
    _
  $region17: #{sam_forward.1} parent=0 // pred_fallthru
    _
  // Predicated region
  $region18: #{sam_forward.1} parent=0 // pred_check
    _
  $region19: #{sam_forward.1} parent=0 // pred_check_branch
    %23 = sbr.rel (0) target = $region21
  $region20: #{sam_forward.1} parent=0 // pred_region
    _
  $region21: #{sam_forward.1} parent=0 // pred_fallthru
    _
  // Predicated region
  $region22: #{sam_forward.1} parent=0 // pred_check
    _
  $region23: #{sam_forward.1} parent=0 // pred_check_branch
    %25 = sbr.rel (0) target = $region25
  $region24: #{sam_forward.1} parent=0 // pred_region
    _
  $region25: #{sam_forward.1} parent=0 // pred_fallthru
    _
  // Predicated region
  $region26: #{sam_forward.1} parent=0 // pred_check
    _
  $region27: #{sam_forward.1} parent=0 // pred_check_branch
    %27 = sbr.rel (0) target = $region29
  $region28: #{sam_forward.1} parent=0 // pred_region
    _
  $region29: #{sam_forward.1} parent=0 // pred_fallthru
    _
  %v28 = vld [vmem:[%s5] sm:$0xff]
  %v29 = vld [vmem:[%s5 + $0x8] sm:$0xff]
  %v30 = vld [vmem:[%s5 + $0x10] sm:$0xff]
  %v31 = vld [vmem:[%s5 + $0x18] sm:$0xff]
  %32 = vrot.lane.b32.xlu0 %v28, 17
  %v33 = vpop.permute.xlu0 %32
  %34 = vrot.lane.b32.xlu0 %v29, 17
  %v35 = vpop.permute.xlu0 %34
  %36 = vrot.lane.b32.xlu0 %v30, 17
  %v37 = vpop.permute.xlu0 %36
  %38 = vrot.lane.b32.xlu0 %v31, 17
  %v39 = vpop.permute.xlu0 %38
  %v40 = vlaneseq
  %v41 = vand.u32 %v40, 127
  %vm42 = vcmp.lt.s32.totalorder %v41, 17
  %v43 = vsel %vm42, %v37, %v39
  %v44 = vsel %vm42, %v35, %v37
  %v45 = vsel %vm42, %v33, %v35
  %v46 = vsel %vm42, %v39, %v33
  %v47 = vld [vmem:[%s4] sm:$0xf]
  %v49 = vlaneseq
  %v50 = vshrl.u32 %v49, 7
  %v51 = vsub.s32 0, %v50
  %v52 = vrot.slane %v47, %v51
  %v53 = vlaneseq
  %v54 = vshrl.u32 %v53, 7
  %v55 = vsub.s32 1, %v54
  %v56 = vrot.slane %v47, %v55
  %v57 = vlaneseq
  %v58 = vshrl.u32 %v57, 7
  %v59 = vsub.s32 2, %v58
  %v60 = vrot.slane %v47, %v59
  %v61 = vlaneseq
  %v62 = vshrl.u32 %v61, 7
  %v63 = vsub.s32 3, %v62
  %v64 = vrot.slane %v47, %v63
  %v69 = vmul.f32 %v46, %v52
  %v70 = vmul.f32 %v45, %v56
  %v71 = vmul.f32 %v44, %v60
  %v72 = vmul.f32 %v43, %v64
  %73 = vrot.lane.b32.xlu0 %v28, 16
  %v74 = vpop.permute.xlu0 %73
  %75 = vrot.lane.b32.xlu0 %v29, 16
  %v76 = vpop.permute.xlu0 %75
  %77 = vrot.lane.b32.xlu0 %v30, 16
  %v78 = vpop.permute.xlu0 %77
  %79 = vrot.lane.b32.xlu0 %v31, 16
  %v80 = vpop.permute.xlu0 %79
  %vm81 = vcmp.lt.s32.totalorder %v41, 16
  %v82 = vsel %vm81, %v78, %v80
  %v83 = vsel %vm81, %v76, %v78
  %v84 = vsel %vm81, %v74, %v76
  %v85 = vsel %vm81, %v80, %v74
  %s86 = scalar_lea.vmem %s4, 4
  %v87 = vld [vmem:[%s86] sm:$0xf]
  %v89 = vlaneseq
  %v90 = vshrl.u32 %v89, 7
  %v91 = vsub.s32 0, %v90
  %v92 = vrot.slane %v87, %v91
  %v93 = vlaneseq
  %v94 = vshrl.u32 %v93, 7
  %v95 = vsub.s32 1, %v94
  %v96 = vrot.slane %v87, %v95
  %v97 = vlaneseq
  %v98 = vshrl.u32 %v97, 7
  %v99 = vsub.s32 2, %v98
  %v100 = vrot.slane %v87, %v99
  %v101 = vlaneseq
  %v102 = vshrl.u32 %v101, 7
  %v103 = vsub.s32 3, %v102
  %v104 = vrot.slane %v87, %v103
  %v109 = vmul.f32 %v85, %v92
  %v110 = vmul.f32 %v84, %v96
  %v111 = vmul.f32 %v83, %v100
  %v112 = vmul.f32 %v82, %v104
  %113 = vrot.lane.b32.xlu0 %v28, 15
  %v114 = vpop.permute.xlu0 %113
  %115 = vrot.lane.b32.xlu0 %v29, 15
  %v116 = vpop.permute.xlu0 %115
  %117 = vrot.lane.b32.xlu0 %v30, 15
  %v118 = vpop.permute.xlu0 %117
  %119 = vrot.lane.b32.xlu0 %v31, 15
  %v120 = vpop.permute.xlu0 %119
  %vm121 = vcmp.lt.s32.totalorder %v41, 15
  %v122 = vsel %vm121, %v118, %v120
  %v123 = vsel %vm121, %v116, %v118
  %v124 = vsel %vm121, %v114, %v116
  %v125 = vsel %vm121, %v120, %v114
  %s126 = scalar_lea.vmem %s4, 8
  %v127 = vld [vmem:[%s126] sm:$0xf]
  %v129 = vlaneseq
  %v130 = vshrl.u32 %v129, 7
  %v131 = vsub.s32 0, %v130
  %v132 = vrot.slane %v127, %v131
  %v133 = vlaneseq
  %v134 = vshrl.u32 %v133, 7
  %v135 = vsub.s32 1, %v134
  %v136 = vrot.slane %v127, %v135
  %v137 = vlaneseq
  %v138 = vshrl.u32 %v137, 7
  %v139 = vsub.s32 2, %v138
  %v140 = vrot.slane %v127, %v139
  %v141 = vlaneseq
  %v142 = vshrl.u32 %v141, 7
  %v143 = vsub.s32 3, %v142
  %v144 = vrot.slane %v127, %v143
  %v149 = vmul.f32 %v125, %v132
  %v150 = vmul.f32 %v124, %v136
  %v151 = vmul.f32 %v123, %v140
  %v152 = vmul.f32 %v122, %v144
  %153 = vrot.lane.b32.xlu0 %v28, 1
  %v154 = vpop.permute.xlu0 %153
  %155 = vrot.lane.b32.xlu0 %v29, 1
  %v156 = vpop.permute.xlu0 %155
  %157 = vrot.lane.b32.xlu0 %v30, 1
  %v158 = vpop.permute.xlu0 %157
  %159 = vrot.lane.b32.xlu0 %v31, 1
  %v160 = vpop.permute.xlu0 %159
  %vm161 = vcmp.lt.s32.totalorder %v41, 1
  %v162 = vsel %vm161, %v158, %v160
  %v163 = vsel %vm161, %v156, %v158
  %v164 = vsel %vm161, %v154, %v156
  %v165 = vsel %vm161, %v160, %v154
  %s166 = scalar_lea.vmem %s4, 12
  %v167 = vld [vmem:[%s166] sm:$0xf]
  %v169 = vlaneseq
  %v170 = vshrl.u32 %v169, 7
  %v171 = vsub.s32 0, %v170
  %v172 = vrot.slane %v167, %v171
  %v173 = vlaneseq
  %v174 = vshrl.u32 %v173, 7
  %v175 = vsub.s32 1, %v174
  %v176 = vrot.slane %v167, %v175
  %v177 = vlaneseq
  %v178 = vshrl.u32 %v177, 7
  %v179 = vsub.s32 2, %v178
  %v180 = vrot.slane %v167, %v179
  %v181 = vlaneseq
  %v182 = vshrl.u32 %v181, 7
  %v183 = vsub.s32 3, %v182
  %v184 = vrot.slane %v167, %v183
  %v189 = vmul.f32 %v165, %v172
  %v190 = vmul.f32 %v164, %v176
  %v191 = vmul.f32 %v163, %v180
  %v192 = vmul.f32 %v162, %v184
  %193 = vrot.lane.b32.xlu0 %v28, 127
  %v194 = vpop.permute.xlu0 %193
  %195 = vrot.lane.b32.xlu0 %v29, 127
  %v196 = vpop.permute.xlu0 %195
  %197 = vrot.lane.b32.xlu0 %v30, 127
  %v198 = vpop.permute.xlu0 %197
  %199 = vrot.lane.b32.xlu0 %v31, 127
  %v200 = vpop.permute.xlu0 %199
  %vm201 = vcmp.lt.s32.totalorder %v41, 127
  %v202 = vsel %vm201, %v198, %v200
  %v203 = vsel %vm201, %v196, %v198
  %v204 = vsel %vm201, %v194, %v196
  %v205 = vsel %vm201, %v200, %v194
  %s206 = scalar_lea.vmem %s4, 20
  %v207 = vld [vmem:[%s206] sm:$0xf]
  %v209 = vlaneseq
  %v210 = vshrl.u32 %v209, 7
  %v211 = vsub.s32 0, %v210
  %v212 = vrot.slane %v207, %v211
  %v213 = vlaneseq
  %v214 = vshrl.u32 %v213, 7
  %v215 = vsub.s32 1, %v214
  %v216 = vrot.slane %v207, %v215
  %v217 = vlaneseq
  %v218 = vshrl.u32 %v217, 7
  %v219 = vsub.s32 2, %v218
  %v220 = vrot.slane %v207, %v219
  %v221 = vlaneseq
  %v222 = vshrl.u32 %v221, 7
  %v223 = vsub.s32 3, %v222
  %v224 = vrot.slane %v207, %v223
  %v229 = vmul.f32 %v204, %v212
  %v230 = vmul.f32 %v203, %v216
  %v231 = vmul.f32 %v202, %v220
  %v232 = vmul.f32 %v205, %v224
  %233 = vrot.lane.b32.xlu0 %v28, 113
  %v234 = vpop.permute.xlu0 %233
  %235 = vrot.lane.b32.xlu0 %v29, 113
  %v236 = vpop.permute.xlu0 %235
  %237 = vrot.lane.b32.xlu0 %v30, 113
  %v238 = vpop.permute.xlu0 %237
  %239 = vrot.lane.b32.xlu0 %v31, 113
  %v240 = vpop.permute.xlu0 %239
  %vm241 = vcmp.lt.s32.totalorder %v41, 113
  %v242 = vsel %vm241, %v238, %v240
  %v243 = vsel %vm241, %v236, %v238
  %v244 = vsel %vm241, %v234, %v236
  %v245 = vsel %vm241, %v240, %v234
  %s246 = scalar_lea.vmem %s4, 24
  %v247 = vld [vmem:[%s246] sm:$0xf]
  %v249 = vlaneseq
  %v250 = vshrl.u32 %v249, 7
  %v251 = vsub.s32 0, %v250
  %v252 = vrot.slane %v247, %v251
  %v253 = vlaneseq
  %v254 = vshrl.u32 %v253, 7
  %v255 = vsub.s32 1, %v254
  %v256 = vrot.slane %v247, %v255
  %v257 = vlaneseq
  %v258 = vshrl.u32 %v257, 7
  %v259 = vsub.s32 2, %v258
  %v260 = vrot.slane %v247, %v259
  %v261 = vlaneseq
  %v262 = vshrl.u32 %v261, 7
  %v263 = vsub.s32 3, %v262
  %v264 = vrot.slane %v247, %v263
  %v269 = vmul.f32 %v244, %v252
  %v270 = vmul.f32 %v243, %v256
  %v271 = vmul.f32 %v242, %v260
  %v272 = vmul.f32 %v245, %v264
  %273 = vrot.lane.b32.xlu0 %v28, 112
  %v274 = vpop.permute.xlu0 %273
  %275 = vrot.lane.b32.xlu0 %v29, 112
  %v276 = vpop.permute.xlu0 %275
  %277 = vrot.lane.b32.xlu0 %v30, 112
  %v278 = vpop.permute.xlu0 %277
  %279 = vrot.lane.b32.xlu0 %v31, 112
  %v280 = vpop.permute.xlu0 %279
  %vm281 = vcmp.lt.s32.totalorder %v41, 112
  %v282 = vsel %vm281, %v278, %v280
  %v283 = vsel %vm281, %v276, %v278
  %v284 = vsel %vm281, %v274, %v276
  %v285 = vsel %vm281, %v280, %v274
  %s286 = scalar_lea.vmem %s4, 28
  %v287 = vld [vmem:[%s286] sm:$0xf]
  %v289 = vlaneseq
  %v290 = vshrl.u32 %v289, 7
  %v291 = vsub.s32 0, %v290
  %v292 = vrot.slane %v287, %v291
  %v293 = vlaneseq
  %v294 = vshrl.u32 %v293, 7
  %v295 = vsub.s32 1, %v294
  %v296 = vrot.slane %v287, %v295
  %v297 = vlaneseq
  %v298 = vshrl.u32 %v297, 7
  %v299 = vsub.s32 2, %v298
  %v300 = vrot.slane %v287, %v299
  %v301 = vlaneseq
  %v302 = vshrl.u32 %v301, 7
  %v303 = vsub.s32 3, %v302
  %v304 = vrot.slane %v287, %v303
  %v309 = vmul.f32 %v284, %v292
  %v310 = vmul.f32 %v283, %v296
  %v311 = vmul.f32 %v282, %v300
  %v312 = vmul.f32 %v285, %v304
  %313 = vrot.lane.b32.xlu0 %v28, 111
  %v314 = vpop.permute.xlu0 %313
  %315 = vrot.lane.b32.xlu0 %v29, 111
  %v316 = vpop.permute.xlu0 %315
  %317 = vrot.lane.b32.xlu0 %v30, 111
  %v318 = vpop.permute.xlu0 %317
  %319 = vrot.lane.b32.xlu0 %v31, 111
  %v320 = vpop.permute.xlu0 %319
  %vm321 = vcmp.lt.s32.totalorder %v41, 111
  %v322 = vsel %vm321, %v318, %v320
  %v323 = vsel %vm321, %v316, %v318
  %v324 = vsel %vm321, %v314, %v316
  %v325 = vsel %vm321, %v320, %v314
  %s326 = scalar_lea.vmem %s4, 32
  %v327 = vld [vmem:[%s326] sm:$0xf]
  %v329 = vlaneseq
  %v330 = vshrl.u32 %v329, 7
  %v331 = vsub.s32 0, %v330
  %v332 = vrot.slane %v327, %v331
  %v333 = vlaneseq
  %v334 = vshrl.u32 %v333, 7
  %v335 = vsub.s32 1, %v334
  %v336 = vrot.slane %v327, %v335
  %v337 = vlaneseq
  %v338 = vshrl.u32 %v337, 7
  %v339 = vsub.s32 2, %v338
  %v340 = vrot.slane %v327, %v339
  %v341 = vlaneseq
  %v342 = vshrl.u32 %v341, 7
  %v343 = vsub.s32 3, %v342
  %v344 = vrot.slane %v327, %v343
  %v349 = vmul.f32 %v324, %v332
  %v350 = vmul.f32 %v323, %v336
  %v351 = vmul.f32 %v322, %v340
  %v352 = vmul.f32 %v325, %v344
  %v353 = vld [vmem:[%s0] sm:$0xff]
  %v354 = vld [vmem:[%s0 + $0x8] sm:$0xff]
  %v355 = vld [vmem:[%s2] sm:$0xff]
  %v356 = vld [vmem:[%s2 + $0x8] sm:$0xff]
  %358 = vset.pattern.permute.xlu0 0
  %359 = vperm.xlu0 %358, %v355
  %v360 = vpop.permute.xlu0 %359
  %363 = vset.pattern.permute.xlu0 0
  %364 = vperm.xlu0 %363, %v356
  %v365 = vpop.permute.xlu0 %364
  %vm367 = vcmask 588800
  %v369 = vsel %vm367, %v353, 0
  %v372 = vsel %vm367, %v354, 0
  %374 = vmatprep.subr.mxu0 %v70
  %375 = vmatpush1.msra.mxu0 %v69
  %376 = vmatprep.subr.mxu0 %v110
  %377 = vmatpush1.msra.mxu0 %v109
  %378 = vmatprep.subr.mxu0 %v150
  %379 = vmatpush1.msra.mxu0 %v149
  %380 = vmatprep.subr.mxu0 %v190
  %381 = vmatpush1.msra.mxu0 %v189
  %382 = vmatprep.subr.mxu0 %v29
  %383 = vmatpush1.msra.mxu0 %v28
  %384 = vmatprep.subr.mxu0 %v230
  %385 = vmatpush1.msra.mxu0 %v229
  %386 = vmatprep.subr.mxu0 %v270
  %387 = vmatpush1.msra.mxu0 %v269
  %388 = vmatprep.subr.mxu0 %v310
  %389 = vmatpush1.msra.mxu0 %v309
  %390 = vmatprep.subr.mxu0 %v350
  %391 = vmatpush1.msra.mxu0 %v349
  %392 = vmatprep.subr.mxu0 0.0
  %393 = vmatpush1.msra.mxu0 0.0
  %394 = vmatprep.subr.mxu0 0.0
  %395 = vmatpush1.msra.mxu0 0.0
  %396 = vmatprep.subr.mxu0 0.0
  %397 = vmatpush1.msra.mxu0 0.0
  %398 = vmatprep.subr.mxu0 0.0
  %399 = vmatpush1.msra.mxu0 0.0
  %400 = vmatprep.subr.mxu0 0.0
  %401 = vmatpush1.msra.mxu0 0.0
  %402 = vmatprep.subr.mxu0 0.0
  %403 = vmatpush1.msra.mxu0 0.0
  %404 = vmatprep.subr.mxu0 0.0
  %405 = vmatpush1.msra.mxu0 0.0
  %406 = vmatprep.subr.mxu0 0.0
  %407 = vmatpush1.msra.mxu0 0.0
  %408 = vmatprep.subr.mxu0 0.0
  %409 = vmatpush1.msra.mxu0 0.0
  %410 = vmatprep.subr.mxu0 0.0
  %411 = vmatpush1.msra.mxu0 0.0
  %412 = vmatprep.subr.mxu0 0.0
  %413 = vmatpush1.msra.mxu0 0.0
  %414 = vmatprep.subr.mxu0 0.0
  %415 = vmatpush1.msra.mxu0 0.0
  %416 = vmatprep.subr.mxu0 0.0
  %417 = vmatpush1.msra.mxu0 0.0
  %418 = vmatprep.subr.mxu0 0.0
  %419 = vmatpush1.msra.mxu0 0.0
  %420 = vmatprep.subr.mxu0 0.0
  %421 = vmatpush1.msra.mxu0 0.0
  %422 = vmatprep.subr.mxu0 0.0
  %423 = vmatpush1.msra.mxu0 0.0
  %424 = vmatprep.subr.mxu0 0.0
  %425 = vmatpush1.msra.mxu0 0.0
  %426 = vmatprep.subr.mxu0 0.0
  %427 = vmatpush1.msra.mxu0 0.0
  %428 = vmatprep.subr.mxu0 0.0
  %429 = vmatpush1.msra.mxu0 0.0
  %430 = vmatprep.subr.mxu0 0.0
  %431 = vmatpush1.msra.mxu0 0.0
  %432 = vmatprep.subr.mxu0 0.0
  %433 = vmatpush1.msra.mxu0 0.0
  %434 = vmatprep.subr.mxu0 0.0
  %435 = vmatpush1.msra.mxu0 0.0
  %436 = vmatprep.subr.mxu0 0.0
  %437 = vmatpush1.msra.mxu0 0.0
  %438 = vmatprep.mubr.f32.mxu0 0.0
  %439 = vmatmul.mubr.f32.gmra.mrb[0].mxu0 %v369
  %v440 = vpop.f32.mrb[0].mxu0
  %v441 = vadd.f32 %v360, %v440
  %v442 = vpop.f32.mrb[0].mxu0
  %v443 = vadd.f32 %v360, %v442
  %444 = vmatprep.mubr.f32.mxu0 0.0
  %445 = vmatmul.mubr.f32.gmra.mrb[0].mxu0 %v372
  %v446 = vpop.f32.mrb[0].mxu0
  %v447 = vadd.f32 %v365, %v446
  %v448 = vpop.f32.mrb[0].mxu0
  %v449 = vadd.f32 %v365, %v448
  %450 = vdwg.mxu0
  %451 = vmatprep.subr.mxu0 %v72
  %452 = vmatpush1.msra.mxu0 %v71
  %453 = vmatprep.subr.mxu0 %v112
  %454 = vmatpush1.msra.mxu0 %v111
  %455 = vmatprep.subr.mxu0 %v152
  %456 = vmatpush1.msra.mxu0 %v151
  %457 = vmatprep.subr.mxu0 %v192
  %458 = vmatpush1.msra.mxu0 %v191
  %459 = vmatprep.subr.mxu0 %v31
  %460 = vmatpush1.msra.mxu0 %v30
  %461 = vmatprep.subr.mxu0 %v232
  %462 = vmatpush1.msra.mxu0 %v231
  %463 = vmatprep.subr.mxu0 %v272
  %464 = vmatpush1.msra.mxu0 %v271
  %465 = vmatprep.subr.mxu0 %v312
  %466 = vmatpush1.msra.mxu0 %v311
  %467 = vmatprep.subr.mxu0 %v352
  %468 = vmatpush1.msra.mxu0 %v351
  %469 = vmatprep.subr.mxu0 0.0
  %470 = vmatpush1.msra.mxu0 0.0
  %471 = vmatprep.subr.mxu0 0.0
  %472 = vmatpush1.msra.mxu0 0.0
  %473 = vmatprep.subr.mxu0 0.0
  %474 = vmatpush1.msra.mxu0 0.0
  %475 = vmatprep.subr.mxu0 0.0
  %476 = vmatpush1.msra.mxu0 0.0
  %477 = vmatprep.subr.mxu0 0.0
  %478 = vmatpush1.msra.mxu0 0.0
  %479 = vmatprep.subr.mxu0 0.0
  %480 = vmatpush1.msra.mxu0 0.0
  %481 = vmatprep.subr.mxu0 0.0
  %482 = vmatpush1.msra.mxu0 0.0
  %483 = vmatprep.subr.mxu0 0.0
  %484 = vmatpush1.msra.mxu0 0.0
  %485 = vmatprep.subr.mxu0 0.0
  %486 = vmatpush1.msra.mxu0 0.0
  %487 = vmatprep.subr.mxu0 0.0
  %488 = vmatpush1.msra.mxu0 0.0
  %489 = vmatprep.subr.mxu0 0.0
  %490 = vmatpush1.msra.mxu0 0.0
  %491 = vmatprep.subr.mxu0 0.0
  %492 = vmatpush1.msra.mxu0 0.0
  %493 = vmatprep.subr.mxu0 0.0
  %494 = vmatpush1.msra.mxu0 0.0
  %495 = vmatprep.subr.mxu0 0.0
  %496 = vmatpush1.msra.mxu0 0.0
  %497 = vmatprep.subr.mxu0 0.0
  %498 = vmatpush1.msra.mxu0 0.0
  %499 = vmatprep.subr.mxu0 0.0
  %500 = vmatpush1.msra.mxu0 0.0
  %501 = vmatprep.subr.mxu0 0.0
  %502 = vmatpush1.msra.mxu0 0.0
  %503 = vmatprep.subr.mxu0 0.0
  %504 = vmatpush1.msra.mxu0 0.0
  %505 = vmatprep.subr.mxu0 0.0
  %506 = vmatpush1.msra.mxu0 0.0
  %507 = vmatprep.subr.mxu0 0.0
  %508 = vmatpush1.msra.mxu0 0.0
  %509 = vmatprep.subr.mxu0 0.0
  %510 = vmatpush1.msra.mxu0 0.0
  %511 = vmatprep.subr.mxu0 0.0
  %512 = vmatpush1.msra.mxu0 0.0
  %513 = vmatprep.subr.mxu0 0.0
  %514 = vmatpush1.msra.mxu0 0.0
  %515 = vmatprep.mubr.f32.mxu0 0.0
  %516 = vmatmul.mubr.f32.gmra.mrb[0].mxu0 %v369
  %v517 = vpop.f32.mrb[0].mxu0
  %v518 = vadd.f32 %v360, %v517
  %v519 = vpop.f32.mrb[0].mxu0
  %v520 = vadd.f32 %v360, %v519
  %521 = vmatprep.mubr.f32.mxu0 0.0
  %522 = vmatmul.mubr.f32.gmra.mrb[0].mxu0 %v372
  %v523 = vpop.f32.mrb[0].mxu0
  %v524 = vadd.f32 %v365, %v523
  %v525 = vpop.f32.mrb[0].mxu0
  %v526 = vadd.f32 %v365, %v525
  %527 = vdwg.mxu0
  %v528 = vld [vmem:[%s6] sm:$0xff]
  %v529 = vld [vmem:[%s6 + $0x8] sm:$0xff]
  %v530 = vld [vmem:[%s6 + $0x10] sm:$0xff]
  %v531 = vld [vmem:[%s6 + $0x18] sm:$0xff]
  %v532 = vadd.f32 %v447, %v528
  %v533 = vadd.f32 %v449, %v529
  %v534 = vadd.f32 %v524, %v530
  %v535 = vadd.f32 %v526, %v531
  %536 = vst [vmem:[%s8] sm:$0xff] %v532
  %537 = vst [vmem:[%s8 + $0x8] sm:$0xff] %v533
  %538 = vst [vmem:[%s8 + $0x10] sm:$0xff] %v534
  %539 = vst [vmem:[%s8 + $0x18] sm:$0xff] %v535
  %540 = vrot.lane.b32.xlu0 %v532, 17
  %v541 = vpop.permute.xlu0 %540
  %542 = vrot.lane.b32.xlu0 %v533, 17
  %v543 = vpop.permute.xlu0 %542
  %544 = vrot.lane.b32.xlu0 %v534, 17
  %v545 = vpop.permute.xlu0 %544
  %546 = vrot.lane.b32.xlu0 %v535, 17
  %v547 = vpop.permute.xlu0 %546
  %v548 = vsel %vm42, %v545, %v547
  %v549 = vsel %vm42, %v543, %v545
  %v550 = vsel %vm42, %v541, %v543
  %v551 = vsel %vm42, %v547, %v541
  %v552 = vld [vmem:[%s4] sm:$0xf]
  %v554 = vlaneseq
  %v555 = vshrl.u32 %v554, 7
  %v556 = vsub.s32 0, %v555
  %v557 = vrot.slane %v552, %v556
  %v558 = vlaneseq
  %v559 = vshrl.u32 %v558, 7
  %v560 = vsub.s32 1, %v559
  %v561 = vrot.slane %v552, %v560
  %v562 = vlaneseq
  %v563 = vshrl.u32 %v562, 7
  %v564 = vsub.s32 2, %v563
  %v565 = vrot.slane %v552, %v564
  %v566 = vlaneseq
  %v567 = vshrl.u32 %v566, 7
  %v568 = vsub.s32 3, %v567
  %v569 = vrot.slane %v552, %v568
  %v574 = vmul.f32 %v551, %v557
  %v575 = vmul.f32 %v550, %v561
  %v576 = vmul.f32 %v549, %v565
  %v577 = vmul.f32 %v548, %v569
  %578 = vrot.lane.b32.xlu0 %v532, 16
  %v579 = vpop.permute.xlu0 %578
  %580 = vrot.lane.b32.xlu0 %v533, 16
  %v581 = vpop.permute.xlu0 %580
  %582 = vrot.lane.b32.xlu0 %v534, 16
  %v583 = vpop.permute.xlu0 %582
  %584 = vrot.lane.b32.xlu0 %v535, 16
  %v585 = vpop.permute.xlu0 %584
  %v586 = vsel %vm81, %v583, %v585
  %v587 = vsel %vm81, %v581, %v583
  %v588 = vsel %vm81, %v579, %v581
  %v589 = vsel %vm81, %v585, %v579
  %v590 = vld [vmem:[%s86] sm:$0xf]
  %v592 = vlaneseq
  %v593 = vshrl.u32 %v592, 7
  %v594 = vsub.s32 0, %v593
  %v595 = vrot.slane %v590, %v594
  %v596 = vlaneseq
  %v597 = vshrl.u32 %v596, 7
  %v598 = vsub.s32 1, %v597
  %v599 = vrot.slane %v590, %v598
  %v600 = vlaneseq
  %v601 = vshrl.u32 %v600, 7
  %v602 = vsub.s32 2, %v601
  %v603 = vrot.slane %v590, %v602
  %v604 = vlaneseq
  %v605 = vshrl.u32 %v604, 7
  %v606 = vsub.s32 3, %v605
  %v607 = vrot.slane %v590, %v606
  %v612 = vmul.f32 %v589, %v595
  %v613 = vmul.f32 %v588, %v599
  %v614 = vmul.f32 %v587, %v603
  %v615 = vmul.f32 %v586, %v607
  %616 = vrot.lane.b32.xlu0 %v532, 15
  %v617 = vpop.permute.xlu0 %616
  %618 = vrot.lane.b32.xlu0 %v533, 15
  %v619 = vpop.permute.xlu0 %618
  %620 = vrot.lane.b32.xlu0 %v534, 15
  %v621 = vpop.permute.xlu0 %620
  %622 = vrot.lane.b32.xlu0 %v535, 15
  %v623 = vpop.permute.xlu0 %622
  %v624 = vsel %vm121, %v621, %v623
  %v625 = vsel %vm121, %v619, %v621
  %v626 = vsel %vm121, %v617, %v619
  %v627 = vsel %vm121, %v623, %v617
  %v628 = vld [vmem:[%s126] sm:$0xf]
  %v630 = vlaneseq
  %v631 = vshrl.u32 %v630, 7
  %v632 = vsub.s32 0, %v631
  %v633 = vrot.slane %v628, %v632
  %v634 = vlaneseq
  %v635 = vshrl.u32 %v634, 7
  %v636 = vsub.s32 1, %v635
  %v637 = vrot.slane %v628, %v636
  %v638 = vlaneseq
  %v639 = vshrl.u32 %v638, 7
  %v640 = vsub.s32 2, %v639
  %v641 = vrot.slane %v628, %v640
  %v642 = vlaneseq
  %v643 = vshrl.u32 %v642, 7
  %v644 = vsub.s32 3, %v643
  %v645 = vrot.slane %v628, %v644
  %v650 = vmul.f32 %v627, %v633
  %v651 = vmul.f32 %v626, %v637
  %v652 = vmul.f32 %v625, %v641
  %v653 = vmul.f32 %v624, %v645
  %654 = vrot.lane.b32.xlu0 %v532, 1
  %v655 = vpop.permute.xlu0 %654
  %656 = vrot.lane.b32.xlu0 %v533, 1
  %v657 = vpop.permute.xlu0 %656
  %658 = vrot.lane.b32.xlu0 %v534, 1
  %v659 = vpop.permute.xlu0 %658
  %660 = vrot.lane.b32.xlu0 %v535, 1
  %v661 = vpop.permute.xlu0 %660
  %v662 = vsel %vm161, %v659, %v661
  %v663 = vsel %vm161, %v657, %v659
  %v664 = vsel %vm161, %v655, %v657
  %v665 = vsel %vm161, %v661, %v655
  %v666 = vld [vmem:[%s166] sm:$0xf]
  %v668 = vlaneseq
  %v669 = vshrl.u32 %v668, 7
  %v670 = vsub.s32 0, %v669
  %v671 = vrot.slane %v666, %v670
  %v672 = vlaneseq
  %v673 = vshrl.u32 %v672, 7
  %v674 = vsub.s32 1, %v673
  %v675 = vrot.slane %v666, %v674
  %v676 = vlaneseq
  %v677 = vshrl.u32 %v676, 7
  %v678 = vsub.s32 2, %v677
  %v679 = vrot.slane %v666, %v678
  %v680 = vlaneseq
  %v681 = vshrl.u32 %v680, 7
  %v682 = vsub.s32 3, %v681
  %v683 = vrot.slane %v666, %v682
  %v688 = vmul.f32 %v665, %v671
  %v689 = vmul.f32 %v664, %v675
  %v690 = vmul.f32 %v663, %v679
  %v691 = vmul.f32 %v662, %v683
  %692 = vrot.lane.b32.xlu0 %v532, 127
  %v693 = vpop.permute.xlu0 %692
  %694 = vrot.lane.b32.xlu0 %v533, 127
  %v695 = vpop.permute.xlu0 %694
  %696 = vrot.lane.b32.xlu0 %v534, 127
  %v697 = vpop.permute.xlu0 %696
  %698 = vrot.lane.b32.xlu0 %v535, 127
  %v699 = vpop.permute.xlu0 %698
  %v700 = vsel %vm201, %v697, %v699
  %v701 = vsel %vm201, %v695, %v697
  %v702 = vsel %vm201, %v693, %v695
  %v703 = vsel %vm201, %v699, %v693
  %v704 = vld [vmem:[%s206] sm:$0xf]
  %v706 = vlaneseq
  %v707 = vshrl.u32 %v706, 7
  %v708 = vsub.s32 0, %v707
  %v709 = vrot.slane %v704, %v708
  %v710 = vlaneseq
  %v711 = vshrl.u32 %v710, 7
  %v712 = vsub.s32 1, %v711
  %v713 = vrot.slane %v704, %v712
  %v714 = vlaneseq
  %v715 = vshrl.u32 %v714, 7
  %v716 = vsub.s32 2, %v715
  %v717 = vrot.slane %v704, %v716
  %v718 = vlaneseq
  %v719 = vshrl.u32 %v718, 7
  %v720 = vsub.s32 3, %v719
  %v721 = vrot.slane %v704, %v720
  %v726 = vmul.f32 %v702, %v709
  %v727 = vmul.f32 %v701, %v713
  %v728 = vmul.f32 %v700, %v717
  %v729 = vmul.f32 %v703, %v721
  %730 = vrot.lane.b32.xlu0 %v532, 113
  %v731 = vpop.permute.xlu0 %730
  %732 = vrot.lane.b32.xlu0 %v533, 113
  %v733 = vpop.permute.xlu0 %732
  %734 = vrot.lane.b32.xlu0 %v534, 113
  %v735 = vpop.permute.xlu0 %734
  %736 = vrot.lane.b32.xlu0 %v535, 113
  %v737 = vpop.permute.xlu0 %736
  %v738 = vsel %vm241, %v735, %v737
  %v739 = vsel %vm241, %v733, %v735
  %v740 = vsel %vm241, %v731, %v733
  %v741 = vsel %vm241, %v737, %v731
  %v742 = vld [vmem:[%s246] sm:$0xf]
  %v744 = vlaneseq
  %v745 = vshrl.u32 %v744, 7
  %v746 = vsub.s32 0, %v745
  %v747 = vrot.slane %v742, %v746
  %v748 = vlaneseq
  %v749 = vshrl.u32 %v748, 7
  %v750 = vsub.s32 1, %v749
  %v751 = vrot.slane %v742, %v750
  %v752 = vlaneseq
  %v753 = vshrl.u32 %v752, 7
  %v754 = vsub.s32 2, %v753
  %v755 = vrot.slane %v742, %v754
  %v756 = vlaneseq
  %v757 = vshrl.u32 %v756, 7
  %v758 = vsub.s32 3, %v757
  %v759 = vrot.slane %v742, %v758
  %v764 = vmul.f32 %v740, %v747
  %v765 = vmul.f32 %v739, %v751
  %v766 = vmul.f32 %v738, %v755
  %v767 = vmul.f32 %v741, %v759
  %768 = vrot.lane.b32.xlu0 %v532, 112
  %v769 = vpop.permute.xlu0 %768
  %770 = vrot.lane.b32.xlu0 %v533, 112
  %v771 = vpop.permute.xlu0 %770
  %772 = vrot.lane.b32.xlu0 %v534, 112
  %v773 = vpop.permute.xlu0 %772
  %774 = vrot.lane.b32.xlu0 %v535, 112
  %v775 = vpop.permute.xlu0 %774
  %v776 = vsel %vm281, %v773, %v775
  %v777 = vsel %vm281, %v771, %v773
  %v778 = vsel %vm281, %v769, %v771
  %v779 = vsel %vm281, %v775, %v769
  %v780 = vld [vmem:[%s286] sm:$0xf]
  %v782 = vlaneseq
  %v783 = vshrl.u32 %v782, 7
  %v784 = vsub.s32 0, %v783
  %v785 = vrot.slane %v780, %v784
  %v786 = vlaneseq
  %v787 = vshrl.u32 %v786, 7
  %v788 = vsub.s32 1, %v787
  %v789 = vrot.slane %v780, %v788
  %v790 = vlaneseq
  %v791 = vshrl.u32 %v790, 7
  %v792 = vsub.s32 2, %v791
  %v793 = vrot.slane %v780, %v792
  %v794 = vlaneseq
  %v795 = vshrl.u32 %v794, 7
  %v796 = vsub.s32 3, %v795
  %v797 = vrot.slane %v780, %v796
  %v802 = vmul.f32 %v778, %v785
  %v803 = vmul.f32 %v777, %v789
  %v804 = vmul.f32 %v776, %v793
  %v805 = vmul.f32 %v779, %v797
  %806 = vrot.lane.b32.xlu0 %v532, 111
  %v807 = vpop.permute.xlu0 %806
  %808 = vrot.lane.b32.xlu0 %v533, 111
  %v809 = vpop.permute.xlu0 %808
  %810 = vrot.lane.b32.xlu0 %v534, 111
  %v811 = vpop.permute.xlu0 %810
  %812 = vrot.lane.b32.xlu0 %v535, 111
  %v813 = vpop.permute.xlu0 %812
  %v814 = vsel %vm321, %v811, %v813
  %v815 = vsel %vm321, %v809, %v811
  %v816 = vsel %vm321, %v807, %v809
  %v817 = vsel %vm321, %v813, %v807
  %v818 = vld [vmem:[%s326] sm:$0xf]
  %v820 = vlaneseq
  %v821 = vshrl.u32 %v820, 7
  %v822 = vsub.s32 0, %v821
  %v823 = vrot.slane %v818, %v822
  %v824 = vlaneseq
  %v825 = vshrl.u32 %v824, 7
  %v826 = vsub.s32 1, %v825
  %v827 = vrot.slane %v818, %v826
  %v828 = vlaneseq
  %v829 = vshrl.u32 %v828, 7
  %v830 = vsub.s32 2, %v829
  %v831 = vrot.slane %v818, %v830
  %v832 = vlaneseq
  %v833 = vshrl.u32 %v832, 7
  %v834 = vsub.s32 3, %v833
  %v835 = vrot.slane %v818, %v834
  %v840 = vmul.f32 %v816, %v823
  %v841 = vmul.f32 %v815, %v827
  %v842 = vmul.f32 %v814, %v831
  %v843 = vmul.f32 %v817, %v835
  %v844 = vld [vmem:[%s1] sm:$0xff]
  %v845 = vld [vmem:[%s3] sm:$0xff]
  %847 = vset.pattern.permute.xlu0 0
  %848 = vperm.xlu0 %847, %v845
  %v849 = vpop.permute.xlu0 %848
  %v852 = vsel %vm367, %v844, 0
  %854 = vmatprep.subr.mxu0 %v575
  %855 = vmatpush1.msra.mxu0 %v574
  %856 = vmatprep.subr.mxu0 %v613
  %857 = vmatpush1.msra.mxu0 %v612
  %858 = vmatprep.subr.mxu0 %v651
  %859 = vmatpush1.msra.mxu0 %v650
  %860 = vmatprep.subr.mxu0 %v689
  %861 = vmatpush1.msra.mxu0 %v688
  %862 = vmatprep.subr.mxu0 %v533
  %863 = vmatpush1.msra.mxu0 %v532
  %864 = vmatprep.subr.mxu0 %v727
  %865 = vmatpush1.msra.mxu0 %v726
  %866 = vmatprep.subr.mxu0 %v765
  %867 = vmatpush1.msra.mxu0 %v764
  %868 = vmatprep.subr.mxu0 %v803
  %869 = vmatpush1.msra.mxu0 %v802
  %870 = vmatprep.subr.mxu0 %v841
  %871 = vmatpush1.msra.mxu0 %v840
  %872 = vmatprep.subr.mxu0 0.0
  %873 = vmatpush1.msra.mxu0 0.0
  %874 = vmatprep.subr.mxu0 0.0
  %875 = vmatpush1.msra.mxu0 0.0
  %876 = vmatprep.subr.mxu0 0.0
  %877 = vmatpush1.msra.mxu0 0.0
  %878 = vmatprep.subr.mxu0 0.0
  %879 = vmatpush1.msra.mxu0 0.0
  %880 = vmatprep.subr.mxu0 0.0
  %881 = vmatpush1.msra.mxu0 0.0
  %882 = vmatprep.subr.mxu0 0.0
  %883 = vmatpush1.msra.mxu0 0.0
  %884 = vmatprep.subr.mxu0 0.0
  %885 = vmatpush1.msra.mxu0 0.0
  %886 = vmatprep.subr.mxu0 0.0
  %887 = vmatpush1.msra.mxu0 0.0
  %888 = vmatprep.subr.mxu0 0.0
  %889 = vmatpush1.msra.mxu0 0.0
  %890 = vmatprep.subr.mxu0 0.0
  %891 = vmatpush1.msra.mxu0 0.0
  %892 = vmatprep.subr.mxu0 0.0
  %893 = vmatpush1.msra.mxu0 0.0
  %894 = vmatprep.subr.mxu0 0.0
  %895 = vmatpush1.msra.mxu0 0.0
  %896 = vmatprep.subr.mxu0 0.0
  %897 = vmatpush1.msra.mxu0 0.0
  %898 = vmatprep.subr.mxu0 0.0
  %899 = vmatpush1.msra.mxu0 0.0
  %900 = vmatprep.subr.mxu0 0.0
  %901 = vmatpush1.msra.mxu0 0.0
  %902 = vmatprep.subr.mxu0 0.0
  %903 = vmatpush1.msra.mxu0 0.0
  %904 = vmatprep.subr.mxu0 0.0
  %905 = vmatpush1.msra.mxu0 0.0
  %906 = vmatprep.subr.mxu0 0.0
  %907 = vmatpush1.msra.mxu0 0.0
  %908 = vmatprep.subr.mxu0 0.0
  %909 = vmatpush1.msra.mxu0 0.0
  %910 = vmatprep.subr.mxu0 0.0
  %911 = vmatpush1.msra.mxu0 0.0
  %912 = vmatprep.subr.mxu0 0.0
  %913 = vmatpush1.msra.mxu0 0.0
  %914 = vmatprep.subr.mxu0 0.0
  %915 = vmatpush1.msra.mxu0 0.0
  %916 = vmatprep.subr.mxu0 0.0
  %917 = vmatpush1.msra.mxu0 0.0
  %918 = vmatprep.mubr.f32.mxu0 0.0
  %919 = vmatmul.mubr.f32.gmra.mrb[0].mxu0 %v852
  %v920 = vpop.f32.mrb[0].mxu0
  %v921 = vadd.f32 %v849, %v920
  %v922 = vpop.f32.mrb[0].mxu0
  %v923 = vadd.f32 %v849, %v922
  %924 = vdwg.mxu0
  %925 = vmatprep.subr.mxu0 %v577
  %926 = vmatpush1.msra.mxu0 %v576
  %927 = vmatprep.subr.mxu0 %v615
  %928 = vmatpush1.msra.mxu0 %v614
  %929 = vmatprep.subr.mxu0 %v653
  %930 = vmatpush1.msra.mxu0 %v652
  %931 = vmatprep.subr.mxu0 %v691
  %932 = vmatpush1.msra.mxu0 %v690
  %933 = vmatprep.subr.mxu0 %v535
  %934 = vmatpush1.msra.mxu0 %v534
  %935 = vmatprep.subr.mxu0 %v729
  %936 = vmatpush1.msra.mxu0 %v728
  %937 = vmatprep.subr.mxu0 %v767
  %938 = vmatpush1.msra.mxu0 %v766
  %939 = vmatprep.subr.mxu0 %v805
  %940 = vmatpush1.msra.mxu0 %v804
  %941 = vmatprep.subr.mxu0 %v843
  %942 = vmatpush1.msra.mxu0 %v842
  %943 = vmatprep.subr.mxu0 0.0
  %944 = vmatpush1.msra.mxu0 0.0
  %945 = vmatprep.subr.mxu0 0.0
  %946 = vmatpush1.msra.mxu0 0.0
  %947 = vmatprep.subr.mxu0 0.0
  %948 = vmatpush1.msra.mxu0 0.0
  %949 = vmatprep.subr.mxu0 0.0
  %950 = vmatpush1.msra.mxu0 0.0
  %951 = vmatprep.subr.mxu0 0.0
  %952 = vmatpush1.msra.mxu0 0.0
  %953 = vmatprep.subr.mxu0 0.0
  %954 = vmatpush1.msra.mxu0 0.0
  %955 = vmatprep.subr.mxu0 0.0
  %956 = vmatpush1.msra.mxu0 0.0
  %957 = vmatprep.subr.mxu0 0.0
  %958 = vmatpush1.msra.mxu0 0.0
  %959 = vmatprep.subr.mxu0 0.0
  %960 = vmatpush1.msra.mxu0 0.0
  %961 = vmatprep.subr.mxu0 0.0
  %962 = vmatpush1.msra.mxu0 0.0
  %963 = vmatprep.subr.mxu0 0.0
  %964 = vmatpush1.msra.mxu0 0.0
  %965 = vmatprep.subr.mxu0 0.0
  %966 = vmatpush1.msra.mxu0 0.0
  %967 = vmatprep.subr.mxu0 0.0
  %968 = vmatpush1.msra.mxu0 0.0
  %969 = vmatprep.subr.mxu0 0.0
  %970 = vmatpush1.msra.mxu0 0.0
  %971 = vmatprep.subr.mxu0 0.0
  %972 = vmatpush1.msra.mxu0 0.0
  %973 = vmatprep.subr.mxu0 0.0
  %974 = vmatpush1.msra.mxu0 0.0
  %975 = vmatprep.subr.mxu0 0.0
  %976 = vmatpush1.msra.mxu0 0.0
  %977 = vmatprep.subr.mxu0 0.0
  %978 = vmatpush1.msra.mxu0 0.0
  %979 = vmatprep.subr.mxu0 0.0
  %980 = vmatpush1.msra.mxu0 0.0
  %981 = vmatprep.subr.mxu0 0.0
  %982 = vmatpush1.msra.mxu0 0.0
  %983 = vmatprep.subr.mxu0 0.0
  %984 = vmatpush1.msra.mxu0 0.0
  %985 = vmatprep.subr.mxu0 0.0
  %986 = vmatpush1.msra.mxu0 0.0
  %987 = vmatprep.subr.mxu0 0.0
  %988 = vmatpush1.msra.mxu0 0.0
  %989 = vmatprep.mubr.f32.mxu0 0.0
  %990 = vmatmul.mubr.f32.gmra.mrb[0].mxu0 %v852
  %v991 = vpop.f32.mrb[0].mxu0
  %v992 = vadd.f32 %v849, %v991
  %v993 = vpop.f32.mrb[0].mxu0
  %v994 = vadd.f32 %v849, %v993
  %995 = vdwg.mxu0
  %v996 = vxor.u32 %v921, 2147483648
  %v997 = vxor.u32 %v923, 2147483648
  %v998 = vxor.u32 %v992, 2147483648
  %v999 = vxor.u32 %v994, 2147483648
  %v1000 = vmul.f32 %v996, 1.442695
  %v1001 = vpow.pop %v1000
  %v1002 = vmul.f32 %v997, 1.442695
  %v1003 = vpow.pop %v1002
  %v1004 = vmul.f32 %v998, 1.442695
  %v1005 = vpow.pop %v1004
  %v1006 = vmul.f32 %v999, 1.442695
  %v1007 = vpow.pop %v1006
  %v1008 = vadd.f32 %v1001, 1.0
  %v1009 = vadd.f32 %v1003, 1.0
  %v1010 = vadd.f32 %v1005, 1.0
  %v1011 = vadd.f32 %v1007, 1.0
  %v1012 = vrcp.pop %v1008
  %v1013 = vmul.f32 1.0, %v1012
  %v1014 = vrcp.pop %v1009
  %v1015 = vmul.f32 1.0, %v1014
  %v1016 = vrcp.pop %v1010
  %v1017 = vmul.f32 1.0, %v1016
  %v1018 = vrcp.pop %v1011
  %v1019 = vmul.f32 1.0, %v1018
  %v1020 = vmul.f32 %v441, %v1013
  %v1021 = vmul.f32 %v443, %v1015
  %v1022 = vmul.f32 %v518, %v1017
  %v1023 = vmul.f32 %v520, %v1019
  %v1024 = vadd.f32 %v1020, %v28
  %v1025 = vadd.f32 %v1021, %v29
  %v1026 = vadd.f32 %v1022, %v30
  %v1027 = vadd.f32 %v1023, %v31
  %1028 = vst [vmem:[%s7] sm:$0xff] %v1024
  %1029 = vst [vmem:[%s7 + $0x8] sm:$0xff] %v1025
  %1030 = vst [vmem:[%s7 + $0x10] sm:$0xff] %v1026
  %1031 = vst [vmem:[%s7 + $0x18] sm:$0xff] %v1027
  // Predicated region
  $region30: #{sam_forward.1} parent=0 // pred_check
    _
  $region31: #{sam_forward.1} parent=0 // pred_check_branch
    %1033 = sbr.rel (0) target = $region33
  $region32: #{sam_forward.1} parent=0 // pred_region
    _
  $region33: #{sam_forward.1} parent=0 // pred_fallthru
    _
  // Predicated region
  $region34: #{sam_forward.1} parent=0 // pred_check
    _
  $region35: #{sam_forward.1} parent=0 // pred_check_branch
    %1035 = sbr.rel (0) target = $region37
  $region36: #{sam_forward.1} parent=0 // pred_region
    _
  $region37: #{sam_forward.1} parent=0 // pred_fallthru
    _
  // Predicated region
  $region38: #{sam_forward.1} parent=0 // pred_check
    _
  $region39: #{sam_forward.1} parent=0 // pred_check_branch
    %1037 = sbr.rel (0) target = $region41
  $region40: #{sam_forward.1} parent=0 // pred_region
    _
  $region41: #{sam_forward.1} parent=0 // pred_fallthru
    _
  // Predicated region
  $region42: #{sam_forward.1} parent=0 // pred_check
    _
  $region43: #{sam_forward.1} parent=0 // pred_check_branch
    %1039 = sbr.rel (0) target = $region45
  $region44: #{sam_forward.1} parent=0 // pred_region
    _
  $region45: #{sam_forward.1} parent=0 // pred_fallthru
    _

</llo_original>
